<compile_context>
chip_gen: v6e
topology: v6e:2x2x1
jax: 0.10.0
libtpu: 0.0.40
codegen_flags: <defaults>
</compile_context>

<pallas_src>
import jax
import jax.numpy as jnp
from jax.experimental import pallas as pl
from jax.experimental.pallas import tpu as pltpu


# ----------------------------------------------------------------------------
# Kernels
# ----------------------------------------------------------------------------
def attn_pool_kernel_single(h_ref, w_ref, o_ref):
    """Fast path: the whole temporal axis is resident in this step."""
    h = h_ref[...]                                    # (b_blk, T, D), native dtype
    w_row = w_ref[...].astype(h.dtype)                # (1, D)

    # logits[b, t] = sum_d h[b, t, d] * w[d]  (VPU multiply + lane reduce, f32 acc).
    # The nn.Linear bias is omitted: softmax(x + c) == softmax(x) for scalar c.
    logits = jnp.sum((h * w_row[None, :, :]).astype(jnp.float32), axis=-1)

    m = jnp.max(logits, axis=-1, keepdims=True)       # (b_blk, 1)
    p = jnp.exp(logits - m)                           # (b_blk, T)
    inv_l = pl.reciprocal(jnp.sum(p, axis=-1, keepdims=True), approx=False)
    wts = (p * inv_l).astype(h.dtype)                 # softmax weights, input dtype

    # Weighted sum over T; multiply in input dtype, accumulate in f32.
    out = jnp.sum((wts[:, :, None] * h).astype(jnp.float32), axis=1)
    o_ref[...] = out.astype(o_ref.dtype)


def attn_pool_kernel_online(h_ref, w_ref, o_ref, m_sc, l_sc, acc_sc):
    """Flash-style online softmax over a tiled temporal axis."""
    t = pl.program_id(1)

    @pl.when(t == 0)
    def _():
        m_sc[...] = jnp.full_like(m_sc, -jnp.inf)
        l_sc[...] = jnp.zeros_like(l_sc)
        acc_sc[...] = jnp.zeros_like(acc_sc)

    h = h_ref[...]                                    # (b_blk, t_blk, D), native dtype
    w_row = w_ref[...].astype(h.dtype)                # (1, D)

    logits = jnp.sum((h * w_row[None, :, :]).astype(jnp.float32), axis=-1)

    m_prev = m_sc[...]                                # (b_blk, 1)
    m_new = jnp.maximum(m_prev, jnp.max(logits, axis=-1, keepdims=True))
    alpha = jnp.exp(m_prev - m_new)                   # (b_blk, 1)
    p = jnp.exp(logits - m_new)                       # (b_blk, t_blk) f32

    l_sc[...] = alpha * l_sc[...] + jnp.sum(p, axis=-1, keepdims=True)
    # Multiply in the input dtype (bf16 stays bf16 on v6e/v7x), reduce in f32.
    weighted = (p.astype(h.dtype)[:, :, None] * h).astype(jnp.float32)
    acc_sc[...] = alpha * acc_sc[...] + jnp.sum(weighted, axis=1)
    m_sc[...] = m_new

    @pl.when(t == pl.num_programs(1) - 1)
    def _():
        # Deferred normalization: one reciprocal on the (b_blk, 1) denominator.
        inv_l = pl.reciprocal(l_sc[...], approx=False)
        o_ref[...] = (acc_sc[...] * inv_l).astype(o_ref.dtype)


# ----------------------------------------------------------------------------
# Block-size selection (tiling-legal, padded-footprint aware, generation aware)
# ----------------------------------------------------------------------------
def _legal_blocks(n, multiple):
    """Divisors of n that are multiples of `multiple`, plus n itself."""
    out = {n}
    d = 1
    while d * d <= n:
        if n % d == 0:
            for c in (d, n // d):
                if c % multiple == 0:
                    out.add(c)
        d += 1
    return sorted(out)


def _tpu_budgets():
    """(h-tile target bytes, vmem_limit_bytes, prefer >=2 batch grid steps)."""
    kind = ""
    try:
        kind = jax.devices()[0].device_kind.lower()
    except Exception:  # pragma: no cover - defensive, keep conservative defaults
        pass
    if "v7" in kind:
        # v7x: 64 MiB VMEM per TensorCore, 2 TCs per chip -> smaller tiles,
        # bounded scoped-VMEM limit, make sure the parallel batch axis has work
        # for both cores.
        return 4 * 1024 * 1024, 48 * 1024 * 1024, True
    if "v5" in kind or "v6" in kind:
        # v5e / v6e: 128 MiB physical VMEM, single TensorCore -> big tiles.
        return 8 * 1024 * 1024, 64 * 1024 * 1024, False
    # Unknown chip: be conservative (v7x-safe).
    return 4 * 1024 * 1024, 48 * 1024 * 1024, True


def _choose_blocks(B, T, D, h_dtype, tile_target_bytes, prefer_split_batch):
    """Pick a tiling-legal (b_blk, t_blk).

    Legality: t_blk is a multiple of the sublane packing (8 for 32-bit, 16 for
    16-bit) or equals T; b_blk is a multiple of 8 or equals B.  The footprint
    estimate uses the lane-padded D so the budget reflects on-chip bytes.
    """
    itemsize = jnp.dtype(h_dtype).itemsize
    t_mult = 16 if itemsize == 2 else (32 if itemsize == 1 else 8)
    d_pad = pl.cdiv(D, 128) * 128                 # lane-padded feature width
    # Per (batch, time) row: the resident h tile (double-buffered by the
    # pipeline) plus ~2 rows of f32 intermediates created in the body
    # (logit product / weighted-sum reduce input).
    per_row_bytes = 2 * d_pad * itemsize + 2 * d_pad * 4
    max_rows = max(1, tile_target_bytes // per_row_bytes)

    b_opts = _legal_blocks(B, 8)
    t_opts = _legal_blocks(T, t_mult)

    if T <= max_rows:
        # Whole temporal axis fits in one step: single-pass softmax fast path.
        t_blk = T
        cap = max(1, max_rows // T)
        fitting = [b for b in b_opts if b <= cap]
        b_blk = max(fitting) if fitting else min(b_opts)
        if prefer_split_batch and b_blk == B:
            # Keep >= 2 steps on the "parallel" batch axis (v7x: 2 TensorCores).
            smaller = [b for b in b_opts if b < B and B // b >= 2]
            if smaller:
                b_blk = max(smaller)
    else:
        # Long sequences: smallest legal batch block, tile T (online softmax).
        b_blk = min(b_opts)
        fitting = [t for t in t_opts if t * b_blk <= max_rows]
        t_blk = max(fitting) if fitting else min(t_opts)
    return b_blk, t_blk


# ----------------------------------------------------------------------------
# Wrapper
# ----------------------------------------------------------------------------
def attention_pool(h, w, b=None, *, b_blk=None, t_blk=None):
    """h: (B, T, D); w: any shape with D elements (nn.Linear(dim, 1) weight);
    b: scalar bias (ignored -- softmax shift invariance).  Returns (B, D)."""
    del b  # mathematically a no-op inside the softmax
    B, T, D = h.shape
    w_row = jnp.reshape(w, (1, D))

    tile_target, vmem_limit, split_batch = _tpu_budgets()
    auto_b, auto_t = _choose_blocks(B, T, D, h.dtype, tile_target, split_batch)
    b_blk = auto_b if b_blk is None else b_blk
    t_blk = auto_t if t_blk is None else t_blk

    itemsize = jnp.dtype(h.dtype).itemsize
    t_mult = 16 if itemsize == 2 else (32 if itemsize == 1 else 8)
    assert B % b_blk == 0 and T % t_blk == 0, "block sizes must divide B and T"
    assert b_blk == B or b_blk % 8 == 0, "b_blk must be a multiple of 8 or == B"
    assert t_blk == T or t_blk % t_mult == 0, "t_blk must be a sublane multiple or == T"

    grid = (B // b_blk, T // t_blk)
    single_t = grid[1] == 1

    kernel = attn_pool_kernel_single if single_t else attn_pool_kernel_online
    scratch = [] if single_t else [
        pltpu.VMEM((b_blk, 1), jnp.float32),   # running max m
        pltpu.VMEM((b_blk, 1), jnp.float32),   # running sum l
        pltpu.VMEM((b_blk, D), jnp.float32),   # weighted accumulator
    ]

    cost = pl.CostEstimate(
        flops=5 * B * T * D,                                    # mul/reduce/softmax/weighted sum
        transcendentals=2 * B * T,                              # exp (+ exp for rescale)
        bytes_accessed=B * T * D * itemsize + B * D * itemsize  # h in, out
        + D * jnp.dtype(w_row.dtype).itemsize,                  # weight row
    )

    return pl.pallas_call(
        kernel,
        out_shape=jax.ShapeDtypeStruct((B, D), h.dtype),
        grid_spec=pltpu.PrefetchScalarGridSpec(
            num_scalar_prefetch=0,
            grid=grid,
            in_specs=[
                pl.BlockSpec((b_blk, t_blk, D), lambda i, j: (i, j, 0)),  # h slab
                pl.BlockSpec((1, D), lambda i, j: (0, 0)),                # weight row
            ],
            out_specs=pl.BlockSpec((b_blk, D), lambda i, j: (i, 0)),
            scratch_shapes=scratch,
        ),
        compiler_params=pltpu.CompilerParams(
            dimension_semantics=("parallel", "arbitrary"),
            vmem_limit_bytes=vmem_limit,
        ),
        cost_estimate=cost,
    )(h, w_row)


def attention_pool_ref(h, w, b):
    # Pure-VPU f32 reference (no MXU precision ambiguity).
    logits = jnp.sum(h * jnp.reshape(w, (1, 1, -1)), axis=-1, keepdims=True) + b
    weights = jax.nn.softmax(logits, axis=1)
    return jnp.sum(weights * h, axis=1)                        # (B, D)


if __name__ == "__main__":
    key = jax.random.PRNGKey(0)
    k_h, k_w, k_b, k_h2, k_w2 = jax.random.split(key, 5)

    # Small shapes consistent with the module: batch=2, seq=8, hidden=32.
    B, T, D = 2, 8, 32
    bound = 1.0 / (D ** 0.5)
    h = jax.random.normal(k_h, (B, T, D), dtype=jnp.float32)
    w = jax.random.uniform(k_w, (1, D), minval=-bound, maxval=bound,
                           dtype=jnp.float32)
    b = jax.random.uniform(k_b, (), minval=-bound, maxval=bound,
                           dtype=jnp.float32)

    out = jax.block_until_ready(attention_pool(h, w, b))
    ref = attention_pool_ref(h, w, b)
    assert out.shape == (B, D)
    assert jnp.allclose(out, ref, atol=1e-5, rtol=1e-5), "mismatch vs reference"

    # Exercise the batch-blocked + T-tiled online-softmax path explicitly.
    B2, T2, D2 = 16, 64, 128
    bound2 = 1.0 / (D2 ** 0.5)
    h2 = jax.random.normal(k_h2, (B2, T2, D2), dtype=jnp.float32)
    w2 = jax.random.uniform(k_w2, (1, D2), minval=-bound2, maxval=bound2,
                            dtype=jnp.float32)
    out2 = jax.block_until_ready(attention_pool(h2, w2, b, b_blk=8, t_blk=16))
    ref2 = attention_pool_ref(h2, w2, b)
    assert jnp.allclose(out2, ref2, atol=1e-5, rtol=1e-5), "mismatch (tiled path)"

    print("KERNEL_OK")
</pallas_src>

<mosaic_0001>
module attributes {stable_mosaic.version = 11 : i64} {
  func.func @attn_pool_kernel_single(%arg0: i32, %arg1: i32, %arg2: memref<2x8x32xf32, #tpu.memory_space<vmem>>, %arg3: memref<1x32xf32, #tpu.memory_space<vmem>>, %arg4: memref<2x32xf32, #tpu.memory_space<vmem>>) attributes {dimension_semantics = [#tpu.dimension_semantics<parallel>, #tpu.dimension_semantics<arbitrary>], iteration_bounds = array<i64: 1, 1>, scalar_prefetch = 0 : i64, scratch_operands = 0 : i64, tpu.core_type = #tpu.core_type<tc>, window_params = [{transform_indices = @transform_0, window_bounds = array<i64: 2, 8, 32>}, {pipeline_mode = #tpu.pipeline_mode<synchronous>, transform_indices = @transform_1, window_bounds = array<i64: 1, 32>}, {transform_indices = @transform_2, window_bounds = array<i64: 2, 32>}]} {
    %c0 = arith.constant 0 : index
    %c0_0 = arith.constant 0 : index
    %c0_1 = arith.constant 0 : index
    %0 = vector.load %arg2[%c0, %c0_0, %c0_1] : memref<2x8x32xf32, #tpu.memory_space<vmem>>, vector<2x8x32xf32>
    %c0_2 = arith.constant 0 : index
    %c0_3 = arith.constant 0 : index
    %1 = vector.load %arg3[%c0_2, %c0_3] : memref<1x32xf32, #tpu.memory_space<vmem>>, vector<1x32xf32>
    %2 = vector.shape_cast %1 : vector<1x32xf32> to vector<1x1x32xf32>
    %3 = vector.broadcast %2 : vector<1x1x32xf32> to vector<2x8x32xf32>
    %4 = arith.mulf %0, %3 : vector<2x8x32xf32>
    %cst = arith.constant dense<0.000000e+00> : vector<2x8xf32>
    %5 = vector.multi_reduction <add>, %4, %cst [2] : vector<2x8x32xf32> to vector<2x8xf32>
    %cst_4 = arith.constant dense<0xFF800000> : vector<2xf32>
    %6 = vector.multi_reduction <maximumf>, %5, %cst_4 [1] : vector<2x8xf32> to vector<2xf32>
    %7 = vector.shape_cast %6 : vector<2xf32> to vector<2x1xf32>
    %8 = vector.broadcast %7 : vector<2x1xf32> to vector<2x8xf32>
    %9 = arith.subf %5, %8 : vector<2x8xf32>
    %10 = math.exp %9 : vector<2x8xf32>
    %cst_5 = arith.constant dense<0.000000e+00> : vector<2xf32>
    %11 = vector.multi_reduction <add>, %10, %cst_5 [1] : vector<2x8xf32> to vector<2xf32>
    %12 = vector.shape_cast %11 : vector<2xf32> to vector<2x1xf32>
    %13 = tpu.reciprocal %12 : vector<2x1xf32> -> vector<2x1xf32>
    %14 = vector.broadcast %13 : vector<2x1xf32> to vector<2x8xf32>
    %15 = arith.mulf %10, %14 : vector<2x8xf32>
    %16 = vector.shape_cast %15 : vector<2x8xf32> to vector<2x8x1xf32>
    %17 = vector.broadcast %16 : vector<2x8x1xf32> to vector<2x8x32xf32>
    %18 = arith.mulf %17, %0 : vector<2x8x32xf32>
    %cst_6 = arith.constant dense<0.000000e+00> : vector<2x32xf32>
    %19 = vector.multi_reduction <add>, %18, %cst_6 [1] : vector<2x8x32xf32> to vector<2x32xf32>
    %c0_7 = arith.constant 0 : index
    %c0_8 = arith.constant 0 : index
    %20 = vector.load %arg4[%c0_7, %c0_8] : memref<2x32xf32, #tpu.memory_space<vmem>>, vector<2x32xf32>
    tpu.vector_store %arg4[%c0_7, %c0_8], %19 {strides = array<i32>} : memref<2x32xf32, #tpu.memory_space<vmem>>, vector<2x32xf32>,
    return
  }
  func.func @transform_0(%arg0: i32, %arg1: i32) -> (i32, i32, i32) {
    %c0_i32 = arith.constant 0 : i32
    %c0_i32_0 = arith.constant 0 : i32
    return %arg0, %arg1, %c0_i32 : i32, i32, i32
  }
  func.func @transform_1(%arg0: i32, %arg1: i32) -> (i32, i32) {
    %c0_i32 = arith.constant 0 : i32
    %c0_i32_0 = arith.constant 0 : i32
    %c0_i32_1 = arith.constant 0 : i32
    return %c0_i32, %c0_i32_0 : i32, i32
  }
  func.func @transform_2(%arg0: i32, %arg1: i32) -> (i32, i32) {
    %c0_i32 = arith.constant 0 : i32
    %c0_i32_0 = arith.constant 0 : i32
    return %arg0, %c0_i32 : i32, i32
  }
}

</mosaic_0001>

<llo_original>
// kernel: tpu_custom_call.1
$region0: #{tpu_custom_call.1}
  #allocation0 [shape = 'u32[]', space=smem, size = 0x4, offset = 0x4, fixed_abs, tag = 'smem constant byte address 0x4 - core index']
  #allocation1 [shape = 'u32[144,128]{1,0:T(1,128)}', space=vmem, size = 0x12000, scoped, tag = 'internal scratch']
  %s0 = inlined_call_operand.hbm [shape: f32[2,8,32], index: 0, kind: input, shape index: {}]
  %s1 = inlined_call_operand.vmem [shape: f32[1,32], index: 1, kind: input, shape index: {}]
  %s2 = inlined_call_operand.hbm [shape: f32[2,32], index: 2, kind: output, shape index: {}]
  %s3 = sld [smem:[#allocation0]]
  $region22: #{tpu_custom_call.1} parent=0
    _
  %s5 = ssub.s32 1, %s3
  %s6 = scalar_select 0, %s5, %s3
  $region1: #{tpu_custom_call.1} parent=0
    #allocation2 [shape = 'u8[8192]{0}', space=vmem, size = 0x2000, scoped, tag = 'input window, operand 0, single buffered']
    #allocation3 [shape = 's32[1]{0}', space=sflag, size = 0x4, scoped, tag = 'scoped memory for tpu_custom_call.1']
    #allocation4 [shape = 's32[1]{0}', space=sflag, size = 0x4, scoped, tag = 'scoped memory for tpu_custom_call.1']
    #allocation5 [shape = 'u8[1024]{0}', space=vmem, size = 0x400, scoped, tag = 'output window, operand 0, single buffered']
    %7 = vsyncpa [#allocation3], 0
    %8 = vsyncpa [#allocation4], 0
    // Predicated region
    $region2: #{tpu_custom_call.1} parent=1 // pred_check
      _
    $region3: #{tpu_custom_call.1} parent=1 // pred_check_branch
      %10 = sbr.rel (0) target = $region5
    $region4: #{tpu_custom_call.1} parent=1 // pred_region
      %s12 = ssub.s32 256, 256
      %13 = vsyncadd [#allocation3], %s12
      %s14 = sshll.u32 [#allocation2], 4
      %s15 = int_to_ptr.vmem [resolvable:$true] %s14
      %20 = dma.hbm_to_vmem [thread:$0]  %s0, 256, %s15, [#allocation3], 128, 128, 8
    $region5: #{tpu_custom_call.1} parent=1 // pred_fallthru
      _
    // Predicated region
    $region6: #{tpu_custom_call.1} parent=1 // pred_check
      _
    $region7: #{tpu_custom_call.1} parent=1 // pred_check_branch
      %22 = sbr.rel (0) target = $region9
    $region8: #{tpu_custom_call.1} parent=1 // pred_region
      _
    $region9: #{tpu_custom_call.1} parent=1 // pred_fallthru
      _
    // Predicated region
    $region10: #{tpu_custom_call.1} parent=1 // pred_check
      _
    $region11: #{tpu_custom_call.1} parent=1 // pred_check_branch
      %24 = sbr.rel (0) target = $region13
    $region12: #{tpu_custom_call.1} parent=1 // pred_region
      %25 = dma.done [#allocation3], 256
    $region13: #{tpu_custom_call.1} parent=1 // pred_fallthru
      _
    %v26 = vld [vmem:[#allocation2] sm:$0xff]
    %v27 = vld [vmem:[#allocation2 + $0x8] sm:$0xff]
    %v28 = vld [vmem:[%s1] sm:$0x1]
    %v30 = vlaneseq
    %v31 = vshrl.u32 %v30, 7
    %v32 = vsub.s32 0, %v31
    %v33 = vrot.slane %v28, %v32
    %v35 = vmul.f32 %v26, %v33
    %v36 = vmul.f32 %v27, %v33
    %vm37 = vcmask 261120
    %v38 = vsel %vm37, %v35, 0.0
    %39 = vadd.xlane.f32.xlu0 %v38
    %v40 = vpop.xlane.xlu0 %39
    %v41 = vsel %vm37, %v36, 0.0
    %42 = vadd.xlane.f32.xlu0 %v41
    %v43 = vpop.xlane.xlu0 %42
    %v46 = vlaneseq
    %v47 = vand.u32 %v46, 127
    %v48 = vlaneseq
    %v49 = vshrl.u32 %v48, 7
    %v50 = vsub.s32 %v47, %v49
    %v51 = vrot.slane %v40, %v50
    %v52 = vlaneseq
    %v53 = vshrl.u32 %v52, 7
    %v54 = vsub.s32 %v47, %v53
    %v55 = vrot.slane %v43, %v54
    %vm56 = vcmask 1041409
    %v57 = vsel %vm56, %v55, %v51
    %vm59 = vcmask 58368
    %v60 = vsel %vm59, %v57, -inf
    %61 = vmax.xlane.f32.xlu0 %v60
    %v62 = vpop.xlane.xlu0 %61
    %v64 = vlaneseq
    %v65 = vshrl.u32 %v64, 7
    %v66 = vsub.s32 0, %v65
    %v67 = vrot.slane %v62, %v66
    %v68 = vlaneseq
    %v69 = vshrl.u32 %v68, 7
    %v70 = vsub.s32 1, %v69
    %v71 = vrot.slane %v62, %v70
    %v74 = vsub.f32 %v40, %v67
    %v75 = vsub.f32 %v43, %v71
    %v76 = vmul.f32 %v74, 1.442695
    %v77 = vpow.pop %v76
    %v78 = vmul.f32 %v75, 1.442695
    %v79 = vpow.pop %v78
    %82 = vset.pattern.permute.xlu0 0
    %83 = vperm.xlu0 %82, %v77
    %v84 = vpop.permute.xlu0 %83
    %85 = vset.pattern.permute.xlu0 0
    %86 = vperm.xlu0 %85, %v79
    %v87 = vpop.permute.xlu0 %86
    %v88 = vlaneseq
    %v89 = vshrl.u32 %v88, 7
    %v90 = vsub.s32 %v47, %v89
    %v91 = vrot.slane %v84, %v90
    %v92 = vlaneseq
    %v93 = vshrl.u32 %v92, 7
    %v94 = vsub.s32 %v47, %v93
    %v95 = vrot.slane %v87, %v94
    %v96 = vsel %vm56, %v95, %v91
    %v98 = vsel %vm59, %v96, 0.0
    %99 = vadd.xlane.f32.xlu0 %v98
    %v100 = vpop.xlane.xlu0 %99
    %v101 = vrcp.pop %v100
    %v103 = vlaneseq
    %v104 = vshrl.u32 %v103, 7
    %v105 = vsub.s32 0, %v104
    %v106 = vrot.slane %v101, %v105
    %v107 = vlaneseq
    %v108 = vshrl.u32 %v107, 7
    %v109 = vsub.s32 1, %v108
    %v110 = vrot.slane %v101, %v109
    %v113 = vmul.f32 %v77, %v106
    %v114 = vmul.f32 %v79, %v110
    %116 = vset.pattern.permute.xlu0 0
    %117 = vperm.xlu0 %116, %v113
    %v118 = vpop.permute.xlu0 %117
    %121 = vset.pattern.permute.xlu0 0
    %122 = vperm.xlu0 %121, %v114
    %v123 = vpop.permute.xlu0 %122
    %v125 = vmul.f32 %v118, %v26
    %v126 = vmul.f32 %v123, %v27
    %v127 = vsel %vm37, %v125, 0.0
    %v128 = vrot.slane %v127, 4
    %v129 = vadd.f32 %v127, %v128
    %v130 = vrot.slane %v129, 2
    %v131 = vadd.f32 %v129, %v130
    %v132 = vrot.slane %v131, 1
    %v133 = vadd.f32 %v131, %v132
    %v134 = vsel %vm37, %v126, 0.0
    %v135 = vrot.slane %v134, 4
    %v136 = vadd.f32 %v134, %v135
    %v137 = vrot.slane %v136, 2
    %v138 = vadd.f32 %v136, %v137
    %v139 = vrot.slane %v138, 1
    %v140 = vadd.f32 %v138, %v139
    %v143 = vsel %vm56, %v140, %v133
    %vm145 = vcmask 254976
    %146 = vst.msk [vmem:[#allocation5] sm:$0x3] %vm145, %v143
    // Predicated region
    $region14: #{tpu_custom_call.1} parent=1 // pred_check
      _
    $region15: #{tpu_custom_call.1} parent=1 // pred_check_branch
      %148 = sbr.rel (0) target = $region17
    $region16: #{tpu_custom_call.1} parent=1 // pred_region
      %s150 = ssub.s32 32, 32
      %151 = vsyncadd [#allocation4], %s150
      %s153 = sshll.u32 [#allocation5], 4
      %s154 = int_to_ptr.vmem [resolvable:$true] %s153
      %156 = dma.vmem_to_hbm [thread:$0]  %s154, 32, %s2, [#allocation4]
    $region17: #{tpu_custom_call.1} parent=1 // pred_fallthru
      _
    // Predicated region
    $region18: #{tpu_custom_call.1} parent=1 // pred_check
      _
    $region19: #{tpu_custom_call.1} parent=1 // pred_check_branch
      %158 = sbr.rel (0) target = $region21
    $region20: #{tpu_custom_call.1} parent=1 // pred_region
      %159 = dma.done [#allocation4], 32
    $region21: #{tpu_custom_call.1} parent=1 // pred_fallthru
      _
    %160 = vsyncpa [#allocation3], 1
    %161 = vsyncpa [#allocation4], 1

</llo_original>
